<compile_context>
chip_gen: v6e
topology: v6e:2x2x1
jax: 0.10.0
libtpu: 0.0.40
codegen_flags: <defaults>
</compile_context>

<pallas_src>
import functools

import jax
import jax.numpy as jnp
import numpy as np
from jax import lax
from jax.experimental import pallas as pl
from jax.experimental.pallas import tpu as pltpu

EPS = 1e-5


def _tap_masks(H, W):
    """(8, H*W) f32 per-tap output-position validity masks (center tap omitted)."""
    p = np.arange(H * W)
    wi, hi = p % W, p // W
    rows = []
    for ky in range(3):
        for kx in range(3):
            if ky == 1 and kx == 1:
                continue
            dy, dx = ky - 1, kx - 1
            ok = np.ones(H * W, dtype=bool)
            if dx == -1:
                ok &= wi >= 1
            elif dx == 1:
                ok &= wi <= W - 2
            if dy == -1:
                ok &= hi >= 1
            elif dy == 1:
                ok &= hi <= H - 2
            rows.append(ok)
    return np.stack(rows).astype(np.float32)


def _block_diag_weights(w_hwio, n_images):
    """HWIO (3,3,Cin,Cout) -> block-diagonal im2col weights (N*Cout, 9*N*Cin).

    Row n*Cout+co, column t*(N*Cin)+m*Cin+ci holds w[t//3, t%3, ci, co] iff n == m,
    so `W_bd @ S` applies the conv independently per image in the (N*C, HW) layout.
    """
    kh, kw, cin, cout = w_hwio.shape
    w_t = jnp.transpose(w_hwio, (0, 1, 3, 2)).reshape(kh * kw, cout, cin)  # (9,Cout,Cin)
    eye = jnp.eye(n_images, dtype=jnp.float32)
    w_bd = jnp.einsum('tok,nm->notmk', w_t.astype(jnp.float32), eye)
    return w_bd.reshape(n_images * cout, kh * kw * n_images * cin)


def _conv3x3_im2col(x, w_bd, masks, W, HW):
    """3x3 'same' conv in (N*C, HW) layout: 9 lane-rolls -> one MXU matmul.

    x:     (R, HW) f32, R = N*Cin (rows n-major, c-minor).
    w_bd:  (N*Cout, 9*R) f32 block-diagonal weights.
    masks: (8, HW) f32 per-tap validity masks (center tap unmasked).
    """
    taps = []
    m = 0
    for ky in range(3):            # static 3x3 taps -> fully unrolled
        for kx in range(3):
            d = (ky - 1) * W + (kx - 1)                 # tap offset inside one image
            shifted = x if d == 0 else pltpu.roll(x, shift=(-d) % HW, axis=1)
            if not (ky == 1 and kx == 1):
                shifted = shifted * masks[m:m + 1, :]   # kill out-of-image taps
                m += 1
            taps.append(shifted)
    s = jnp.concatenate(taps, axis=0)                   # (9*R, HW) im2col matrix
    return jnp.dot(w_bd, s, preferred_element_type=jnp.float32)   # (N*Cout, HW)


def _bn_train(y, gamma_full, beta_full, n_images, channels, inv_count):
    """Training-mode BatchNorm2d on (N*C, HW); per-channel stats over (N, H, W).

    Cross-image accumulation uses sublane rolls of the dense value, so the
    per-channel mean/var come out already replicated on every image row.
    Two-pass (mean, then centered variance) for numerical robustness.
    """
    def channel_sum(v):                                 # (N*C, HW) -> (N*C, 1)
        t = v
        for k in range(1, n_images):
            t = t + pltpu.roll(v, shift=k * channels, axis=0)
        return jnp.sum(t, axis=1, keepdims=True)

    mean = channel_sum(y) * inv_count                   # (N*C, 1), per-channel
    yc = y - mean
    var = channel_sum(yc * yc) * inv_count
    scale = gamma_full * lax.rsqrt(var + EPS)
    return yc * scale + beta_full


def residual_kernel(x_ref, m_ref, w1_ref, g1_ref, b1_ref, w2_ref, g2_ref, b2_ref,
                    out_ref, *, n_images, channels, H, W):
    HW = H * W
    x = x_ref[...].astype(jnp.float32)
    masks = m_ref[...]
    inv_count = jnp.float32(1.0 / (n_images * HW))

    # Y = relu(bn1(conv1(X)))   (conv bias dropped: cancelled by BN mean)
    y = _conv3x3_im2col(x, w1_ref[...], masks, W, HW)
    y = _bn_train(y, g1_ref[...], b1_ref[...], n_images, channels, inv_count)
    y = jnp.maximum(y, 0.0)

    # Y = bn2(conv2(Y))
    y = _conv3x3_im2col(y, w2_ref[...], masks, W, HW)
    y = _bn_train(y, g2_ref[...], b2_ref[...], n_images, channels, inv_count)

    # Y += X ; relu     (identity skip: Cin == Cout, stride 1)
    out_ref[...] = jnp.maximum(y + x, 0.0).astype(out_ref.dtype)


@jax.jit
def residual_forward(x_nchw, params):
    """Wrapper: NCHW in / NCHW out. Only free reshapes around the kernel."""
    w1, b1, g1, be1, w2, b2, g2, be2 = params
    del b1, b2          # exactly cancelled by training-mode BN mean subtraction
    N, C, H, W = x_nchw.shape
    Cout = w1.shape[3]
    assert C == Cout, "identity skip requires Cin == Cout (use_1x1conv=False)"
    HW = H * W

    x_rp = x_nchw.reshape(N * C, HW)                    # pure reshape, no transpose
    masks = jnp.asarray(_tap_masks(H, W))               # (8, HW) constant

    def tile_param(p):                                  # (C,) -> (N*C, 1), chan = row % C
        return jnp.tile(p.astype(jnp.float32), N).reshape(N * Cout, 1)

    kernel = functools.partial(residual_kernel, n_images=N, channels=Cout, H=H, W=W)
    out_rp = pl.pallas_call(
        kernel,
        out_shape=jax.ShapeDtypeStruct((N * Cout, HW), x_nchw.dtype),
        in_specs=[pl.BlockSpec(memory_space=pltpu.MemorySpace.VMEM)] * 8,
        out_specs=pl.BlockSpec(memory_space=pltpu.MemorySpace.VMEM),
    )(
        x_rp, masks,
        _block_diag_weights(w1, N), tile_param(g1), tile_param(be1),
        _block_diag_weights(w2, N), tile_param(g2), tile_param(be2),
    )
    return out_rp.reshape(N, Cout, H, W)                # pure reshape back to NCHW


def residual_ref(x_nchw, params):
    """Pure-JAX reference with identical semantics (for correctness check)."""
    w1, b1, g1, be1, w2, b2, g2, be2 = params
    x = jnp.transpose(x_nchw, (0, 2, 3, 1)).astype(jnp.float32)

    def conv(x, w, b):
        y = lax.conv_general_dilated(x, w, (1, 1), 'SAME',
                                     dimension_numbers=('NHWC', 'HWIO', 'NHWC'))
        return y + b

    def bn(y, g, be):
        m = jnp.mean(y, axis=(0, 1, 2), keepdims=True)
        v = jnp.mean((y - m) ** 2, axis=(0, 1, 2), keepdims=True)
        return (y - m) * lax.rsqrt(v + EPS) * g + be

    y = jax.nn.relu(bn(conv(x, w1, b1), g1, be1))
    y = bn(conv(y, w2, b2), g2, be2)
    y = jax.nn.relu(y + x)
    return jnp.transpose(y, (0, 3, 1, 2))


if __name__ == "__main__":
    # Residual(input_channels=4, num_channels=4)  on x of shape (2, 4, 16, 16)
    N, Cin, H, W = 2, 4, 16, 16
    Cout = 4

    key = jax.random.PRNGKey(0)
    kx, kw1, kb1, kg1, kbe1, kw2, kb2, kg2, kbe2 = jax.random.split(key, 9)

    x = jax.random.normal(kx, (N, Cin, H, W), jnp.float32)

    w1 = 0.1 * jax.random.normal(kw1, (3, 3, Cin, Cout), jnp.float32)
    b1 = 0.1 * jax.random.normal(kb1, (Cout,), jnp.float32)
    g1 = 1.0 + 0.1 * jax.random.normal(kg1, (Cout,), jnp.float32)
    be1 = 0.1 * jax.random.normal(kbe1, (Cout,), jnp.float32)
    w2 = 0.1 * jax.random.normal(kw2, (3, 3, Cout, Cout), jnp.float32)
    b2 = 0.1 * jax.random.normal(kb2, (Cout,), jnp.float32)
    g2 = 1.0 + 0.1 * jax.random.normal(kg2, (Cout,), jnp.float32)
    be2 = 0.1 * jax.random.normal(kbe2, (Cout,), jnp.float32)

    params = (w1, b1, g1, be1, w2, b2, g2, be2)

    out = jax.block_until_ready(residual_forward(x, params))
    ref = jax.block_until_ready(residual_ref(x, params))

    np.testing.assert_allclose(np.asarray(out), np.asarray(ref), rtol=1e-3, atol=1e-3)
    print("KERNEL_OK")
</pallas_src>

<mosaic_0001>
module attributes {stable_mosaic.version = 11 : i64} {
  func.func @residual_kernel(%arg0: memref<8x256xf32, #tpu.memory_space<vmem>>, %arg1: memref<8x256xf32, #tpu.memory_space<vmem>>, %arg2: memref<8x72xf32, #tpu.memory_space<vmem>>, %arg3: memref<8x1xf32, #tpu.memory_space<vmem>>, %arg4: memref<8x1xf32, #tpu.memory_space<vmem>>, %arg5: memref<8x72xf32, #tpu.memory_space<vmem>>, %arg6: memref<8x1xf32, #tpu.memory_space<vmem>>, %arg7: memref<8x1xf32, #tpu.memory_space<vmem>>, %arg8: memref<8x256xf32, #tpu.memory_space<vmem>>) attributes {dimension_semantics = [], scalar_prefetch = 0 : i64, scratch_operands = 0 : i64, tpu.core_type = #tpu.core_type<tc>} {
    %c0 = arith.constant 0 : index
    %c0_0 = arith.constant 0 : index
    %0 = vector.load %arg0[%c0, %c0_0] : memref<8x256xf32, #tpu.memory_space<vmem>>, vector<8x256xf32>
    %c0_1 = arith.constant 0 : index
    %c0_2 = arith.constant 0 : index
    %1 = vector.load %arg1[%c0_1, %c0_2] : memref<8x256xf32, #tpu.memory_space<vmem>>, vector<8x256xf32>
    %c0_3 = arith.constant 0 : index
    %c0_4 = arith.constant 0 : index
    %2 = vector.load %arg2[%c0_3, %c0_4] : memref<8x72xf32, #tpu.memory_space<vmem>>, vector<8x72xf32>
    %c17_i32 = arith.constant 17 : i32
    %3 = tpu.dynamic_rotate %0 by %c17_i32 dim 1 : vector<8x256xf32>, i32 -> vector<8x256xf32>
    %4 = vector.extract_strided_slice %1 {offsets = [0, 0], sizes = [1, 256], strides = [1, 1]} : vector<8x256xf32> to vector<1x256xf32>
    %5 = vector.broadcast %4 : vector<1x256xf32> to vector<8x256xf32>
    %6 = arith.mulf %3, %5 : vector<8x256xf32>
    %c16_i32 = arith.constant 16 : i32
    %7 = tpu.dynamic_rotate %0 by %c16_i32 dim 1 : vector<8x256xf32>, i32 -> vector<8x256xf32>
    %8 = vector.extract_strided_slice %1 {offsets = [1, 0], sizes = [1, 256], strides = [1, 1]} : vector<8x256xf32> to vector<1x256xf32>
    %9 = vector.broadcast %8 : vector<1x256xf32> to vector<8x256xf32>
    %10 = arith.mulf %7, %9 : vector<8x256xf32>
    %c15_i32 = arith.constant 15 : i32
    %11 = tpu.dynamic_rotate %0 by %c15_i32 dim 1 : vector<8x256xf32>, i32 -> vector<8x256xf32>
    %12 = vector.extract_strided_slice %1 {offsets = [2, 0], sizes = [1, 256], strides = [1, 1]} : vector<8x256xf32> to vector<1x256xf32>
    %13 = vector.broadcast %12 : vector<1x256xf32> to vector<8x256xf32>
    %14 = arith.mulf %11, %13 : vector<8x256xf32>
    %c1_i32 = arith.constant 1 : i32
    %15 = tpu.dynamic_rotate %0 by %c1_i32 dim 1 : vector<8x256xf32>, i32 -> vector<8x256xf32>
    %16 = vector.extract_strided_slice %1 {offsets = [3, 0], sizes = [1, 256], strides = [1, 1]} : vector<8x256xf32> to vector<1x256xf32>
    %17 = vector.broadcast %16 : vector<1x256xf32> to vector<8x256xf32>
    %18 = arith.mulf %15, %17 : vector<8x256xf32>
    %c255_i32 = arith.constant 255 : i32
    %19 = tpu.dynamic_rotate %0 by %c255_i32 dim 1 : vector<8x256xf32>, i32 -> vector<8x256xf32>
    %20 = vector.extract_strided_slice %1 {offsets = [4, 0], sizes = [1, 256], strides = [1, 1]} : vector<8x256xf32> to vector<1x256xf32>
    %21 = vector.broadcast %20 : vector<1x256xf32> to vector<8x256xf32>
    %22 = arith.mulf %19, %21 : vector<8x256xf32>
    %c241_i32 = arith.constant 241 : i32
    %23 = tpu.dynamic_rotate %0 by %c241_i32 dim 1 : vector<8x256xf32>, i32 -> vector<8x256xf32>
    %24 = vector.extract_strided_slice %1 {offsets = [5, 0], sizes = [1, 256], strides = [1, 1]} : vector<8x256xf32> to vector<1x256xf32>
    %25 = vector.broadcast %24 : vector<1x256xf32> to vector<8x256xf32>
    %26 = arith.mulf %23, %25 : vector<8x256xf32>
    %c240_i32 = arith.constant 240 : i32
    %27 = tpu.dynamic_rotate %0 by %c240_i32 dim 1 : vector<8x256xf32>, i32 -> vector<8x256xf32>
    %28 = vector.extract_strided_slice %1 {offsets = [6, 0], sizes = [1, 256], strides = [1, 1]} : vector<8x256xf32> to vector<1x256xf32>
    %29 = vector.broadcast %28 : vector<1x256xf32> to vector<8x256xf32>
    %30 = arith.mulf %27, %29 : vector<8x256xf32>
    %c239_i32 = arith.constant 239 : i32
    %31 = tpu.dynamic_rotate %0 by %c239_i32 dim 1 : vector<8x256xf32>, i32 -> vector<8x256xf32>
    %32 = vector.extract_strided_slice %1 {offsets = [7, 0], sizes = [1, 256], strides = [1, 1]} : vector<8x256xf32> to vector<1x256xf32>
    %33 = vector.broadcast %32 : vector<1x256xf32> to vector<8x256xf32>
    %34 = arith.mulf %31, %33 : vector<8x256xf32>
    %35 = tpu.concatenate %6, %10, %14, %18, %0, %22, %26, %30, %34 in 0 : vector<8x256xf32>, vector<8x256xf32>, vector<8x256xf32>, vector<8x256xf32>, vector<8x256xf32>, vector<8x256xf32>, vector<8x256xf32>, vector<8x256xf32>, vector<8x256xf32> -> vector<72x256xf32>
    %cst = arith.constant dense<0.000000e+00> : vector<8x256xf32>
    %36 = tpu.matmul %2, %35, %cst {dimension_numbers = #tpu.dot_dimension_numbers<[1], [0], [0], [1], [0, 0, 1, 1], [], []>} : vector<8x72xf32>, vector<72x256xf32>, vector<8x256xf32> -> vector<8x256xf32>
    %c0_5 = arith.constant 0 : index
    %c0_6 = arith.constant 0 : index
    %37 = vector.load %arg3[%c0_5, %c0_6] : memref<8x1xf32, #tpu.memory_space<vmem>>, vector<8x1xf32>
    %c0_7 = arith.constant 0 : index
    %c0_8 = arith.constant 0 : index
    %38 = vector.load %arg4[%c0_7, %c0_8] : memref<8x1xf32, #tpu.memory_space<vmem>>, vector<8x1xf32>
    %c4_i32 = arith.constant 4 : i32
    %39 = tpu.dynamic_rotate %36 by %c4_i32 dim 0 : vector<8x256xf32>, i32 -> vector<8x256xf32>
    %40 = arith.addf %36, %39 : vector<8x256xf32>
    %cst_9 = arith.constant dense<0.000000e+00> : vector<8xf32>
    %41 = vector.multi_reduction <add>, %40, %cst_9 [1] : vector<8x256xf32> to vector<8xf32>
    %42 = vector.shape_cast %41 : vector<8xf32> to vector<8x1xf32>
    %cst_10 = arith.constant 0.001953125 : f32
    %43 = vector.broadcast %cst_10 : f32 to vector<8x1xf32>
    %44 = arith.mulf %42, %43 : vector<8x1xf32>
    %45 = vector.broadcast %44 : vector<8x1xf32> to vector<8x256xf32>
    %46 = arith.subf %36, %45 : vector<8x256xf32>
    %47 = arith.mulf %46, %46 : vector<8x256xf32>
    %c4_i32_11 = arith.constant 4 : i32
    %48 = tpu.dynamic_rotate %47 by %c4_i32_11 dim 0 : vector<8x256xf32>, i32 -> vector<8x256xf32>
    %49 = arith.addf %47, %48 : vector<8x256xf32>
    %cst_12 = arith.constant dense<0.000000e+00> : vector<8xf32>
    %50 = vector.multi_reduction <add>, %49, %cst_12 [1] : vector<8x256xf32> to vector<8xf32>
    %51 = vector.shape_cast %50 : vector<8xf32> to vector<8x1xf32>
    %cst_13 = arith.constant 0.001953125 : f32
    %52 = vector.broadcast %cst_13 : f32 to vector<8x1xf32>
    %53 = arith.mulf %51, %52 : vector<8x1xf32>
    %cst_14 = arith.constant 9.99999974E-6 : f32
    %54 = vector.broadcast %cst_14 : f32 to vector<8x1xf32>
    %55 = arith.addf %53, %54 : vector<8x1xf32>
    %56 = math.rsqrt %55 : vector<8x1xf32>
    %57 = arith.mulf %37, %56 : vector<8x1xf32>
    %58 = vector.broadcast %57 : vector<8x1xf32> to vector<8x256xf32>
    %59 = arith.mulf %46, %58 : vector<8x256xf32>
    %60 = vector.broadcast %38 : vector<8x1xf32> to vector<8x256xf32>
    %61 = arith.addf %59, %60 : vector<8x256xf32>
    %cst_15 = arith.constant 0.000000e+00 : f32
    %62 = vector.broadcast %cst_15 : f32 to vector<8x256xf32>
    %63 = arith.maximumf %61, %62 : vector<8x256xf32>
    %c0_16 = arith.constant 0 : index
    %c0_17 = arith.constant 0 : index
    %64 = vector.load %arg5[%c0_16, %c0_17] : memref<8x72xf32, #tpu.memory_space<vmem>>, vector<8x72xf32>
    %c17_i32_18 = arith.constant 17 : i32
    %65 = tpu.dynamic_rotate %63 by %c17_i32_18 dim 1 : vector<8x256xf32>, i32 -> vector<8x256xf32>
    %66 = vector.extract_strided_slice %1 {offsets = [0, 0], sizes = [1, 256], strides = [1, 1]} : vector<8x256xf32> to vector<1x256xf32>
    %67 = vector.broadcast %66 : vector<1x256xf32> to vector<8x256xf32>
    %68 = arith.mulf %65, %67 : vector<8x256xf32>
    %c16_i32_19 = arith.constant 16 : i32
    %69 = tpu.dynamic_rotate %63 by %c16_i32_19 dim 1 : vector<8x256xf32>, i32 -> vector<8x256xf32>
    %70 = vector.extract_strided_slice %1 {offsets = [1, 0], sizes = [1, 256], strides = [1, 1]} : vector<8x256xf32> to vector<1x256xf32>
    %71 = vector.broadcast %70 : vector<1x256xf32> to vector<8x256xf32>
    %72 = arith.mulf %69, %71 : vector<8x256xf32>
    %c15_i32_20 = arith.constant 15 : i32
    %73 = tpu.dynamic_rotate %63 by %c15_i32_20 dim 1 : vector<8x256xf32>, i32 -> vector<8x256xf32>
    %74 = vector.extract_strided_slice %1 {offsets = [2, 0], sizes = [1, 256], strides = [1, 1]} : vector<8x256xf32> to vector<1x256xf32>
    %75 = vector.broadcast %74 : vector<1x256xf32> to vector<8x256xf32>
    %76 = arith.mulf %73, %75 : vector<8x256xf32>
    %c1_i32_21 = arith.constant 1 : i32
    %77 = tpu.dynamic_rotate %63 by %c1_i32_21 dim 1 : vector<8x256xf32>, i32 -> vector<8x256xf32>
    %78 = vector.extract_strided_slice %1 {offsets = [3, 0], sizes = [1, 256], strides = [1, 1]} : vector<8x256xf32> to vector<1x256xf32>
    %79 = vector.broadcast %78 : vector<1x256xf32> to vector<8x256xf32>
    %80 = arith.mulf %77, %79 : vector<8x256xf32>
    %c255_i32_22 = arith.constant 255 : i32
    %81 = tpu.dynamic_rotate %63 by %c255_i32_22 dim 1 : vector<8x256xf32>, i32 -> vector<8x256xf32>
    %82 = vector.extract_strided_slice %1 {offsets = [4, 0], sizes = [1, 256], strides = [1, 1]} : vector<8x256xf32> to vector<1x256xf32>
    %83 = vector.broadcast %82 : vector<1x256xf32> to vector<8x256xf32>
    %84 = arith.mulf %81, %83 : vector<8x256xf32>
    %c241_i32_23 = arith.constant 241 : i32
    %85 = tpu.dynamic_rotate %63 by %c241_i32_23 dim 1 : vector<8x256xf32>, i32 -> vector<8x256xf32>
    %86 = vector.extract_strided_slice %1 {offsets = [5, 0], sizes = [1, 256], strides = [1, 1]} : vector<8x256xf32> to vector<1x256xf32>
    %87 = vector.broadcast %86 : vector<1x256xf32> to vector<8x256xf32>
    %88 = arith.mulf %85, %87 : vector<8x256xf32>
    %c240_i32_24 = arith.constant 240 : i32
    %89 = tpu.dynamic_rotate %63 by %c240_i32_24 dim 1 : vector<8x256xf32>, i32 -> vector<8x256xf32>
    %90 = vector.extract_strided_slice %1 {offsets = [6, 0], sizes = [1, 256], strides = [1, 1]} : vector<8x256xf32> to vector<1x256xf32>
    %91 = vector.broadcast %90 : vector<1x256xf32> to vector<8x256xf32>
    %92 = arith.mulf %89, %91 : vector<8x256xf32>
    %c239_i32_25 = arith.constant 239 : i32
    %93 = tpu.dynamic_rotate %63 by %c239_i32_25 dim 1 : vector<8x256xf32>, i32 -> vector<8x256xf32>
    %94 = vector.extract_strided_slice %1 {offsets = [7, 0], sizes = [1, 256], strides = [1, 1]} : vector<8x256xf32> to vector<1x256xf32>
    %95 = vector.broadcast %94 : vector<1x256xf32> to vector<8x256xf32>
    %96 = arith.mulf %93, %95 : vector<8x256xf32>
    %97 = tpu.concatenate %68, %72, %76, %80, %63, %84, %88, %92, %96 in 0 : vector<8x256xf32>, vector<8x256xf32>, vector<8x256xf32>, vector<8x256xf32>, vector<8x256xf32>, vector<8x256xf32>, vector<8x256xf32>, vector<8x256xf32>, vector<8x256xf32> -> vector<72x256xf32>
    %cst_26 = arith.constant dense<0.000000e+00> : vector<8x256xf32>
    %98 = tpu.matmul %64, %97, %cst_26 {dimension_numbers = #tpu.dot_dimension_numbers<[1], [0], [0], [1], [0, 0, 1, 1], [], []>} : vector<8x72xf32>, vector<72x256xf32>, vector<8x256xf32> -> vector<8x256xf32>
    %c0_27 = arith.constant 0 : index
    %c0_28 = arith.constant 0 : index
    %99 = vector.load %arg6[%c0_27, %c0_28] : memref<8x1xf32, #tpu.memory_space<vmem>>, vector<8x1xf32>
    %c0_29 = arith.constant 0 : index
    %c0_30 = arith.constant 0 : index
    %100 = vector.load %arg7[%c0_29, %c0_30] : memref<8x1xf32, #tpu.memory_space<vmem>>, vector<8x1xf32>
    %c4_i32_31 = arith.constant 4 : i32
    %101 = tpu.dynamic_rotate %98 by %c4_i32_31 dim 0 : vector<8x256xf32>, i32 -> vector<8x256xf32>
    %102 = arith.addf %98, %101 : vector<8x256xf32>
    %cst_32 = arith.constant dense<0.000000e+00> : vector<8xf32>
    %103 = vector.multi_reduction <add>, %102, %cst_32 [1] : vector<8x256xf32> to vector<8xf32>
    %104 = vector.shape_cast %103 : vector<8xf32> to vector<8x1xf32>
    %cst_33 = arith.constant 0.001953125 : f32
    %105 = vector.broadcast %cst_33 : f32 to vector<8x1xf32>
    %106 = arith.mulf %104, %105 : vector<8x1xf32>
    %107 = vector.broadcast %106 : vector<8x1xf32> to vector<8x256xf32>
    %108 = arith.subf %98, %107 : vector<8x256xf32>
    %109 = arith.mulf %108, %108 : vector<8x256xf32>
    %c4_i32_34 = arith.constant 4 : i32
    %110 = tpu.dynamic_rotate %109 by %c4_i32_34 dim 0 : vector<8x256xf32>, i32 -> vector<8x256xf32>
    %111 = arith.addf %109, %110 : vector<8x256xf32>
    %cst_35 = arith.constant dense<0.000000e+00> : vector<8xf32>
    %112 = vector.multi_reduction <add>, %111, %cst_35 [1] : vector<8x256xf32> to vector<8xf32>
    %113 = vector.shape_cast %112 : vector<8xf32> to vector<8x1xf32>
    %cst_36 = arith.constant 0.001953125 : f32
    %114 = vector.broadcast %cst_36 : f32 to vector<8x1xf32>
    %115 = arith.mulf %113, %114 : vector<8x1xf32>
    %cst_37 = arith.constant 9.99999974E-6 : f32
    %116 = vector.broadcast %cst_37 : f32 to vector<8x1xf32>
    %117 = arith.addf %115, %116 : vector<8x1xf32>
    %118 = math.rsqrt %117 : vector<8x1xf32>
    %119 = arith.mulf %99, %118 : vector<8x1xf32>
    %120 = vector.broadcast %119 : vector<8x1xf32> to vector<8x256xf32>
    %121 = arith.mulf %108, %120 : vector<8x256xf32>
    %122 = vector.broadcast %100 : vector<8x1xf32> to vector<8x256xf32>
    %123 = arith.addf %121, %122 : vector<8x256xf32>
    %124 = arith.addf %123, %0 : vector<8x256xf32>
    %cst_38 = arith.constant 0.000000e+00 : f32
    %125 = vector.broadcast %cst_38 : f32 to vector<8x256xf32>
    %126 = arith.maximumf %124, %125 : vector<8x256xf32>
    %c0_39 = arith.constant 0 : index
    %c0_40 = arith.constant 0 : index
    %127 = vector.load %arg8[%c0_39, %c0_40] : memref<8x256xf32, #tpu.memory_space<vmem>>, vector<8x256xf32>
    tpu.vector_store %arg8[%c0_39, %c0_40], %126 {strides = array<i32>} : memref<8x256xf32, #tpu.memory_space<vmem>>, vector<8x256xf32>,
    return
  }
}

</mosaic_0001>

<llo_original>
// kernel: tile.23
$region0: #{tile.23}
  #allocation0 [shape = 's32[1]{0}', space=sflag, size = 0x4, scoped, tag = 'scoped memory for tile.23']
  %s0 = inlined_call_operand.vmem [shape: f32[4], index: 0, kind: input, shape index: {}]
  %s1 = inlined_call_operand.vmem [shape: f32[2,4], index: 1, kind: output, shape index: {}]
  // Predicated region
  $region2: #{tile.23} parent=0 // pred_check
    _
  $region3: #{tile.23} parent=0 // pred_check_branch
    %3 = sbr.rel (0) target = $region5
  $region4: #{tile.23} parent=0 // pred_region
    _
  $region5: #{tile.23} parent=0 // pred_fallthru
    _
  %v4 = vld [vmem:[%s0] ss:$0 sm:$0xff]
  %5 = vst [vmem:[%s1] sm:$0x3] %v4

// kernel: tile.0
$region0: #{tile.0}
  %s0 = inlined_call_operand.vmem [shape: f32[2,4], index: 0, kind: input, shape index: {}]
  %s1 = inlined_call_operand.vmem [shape: f32[8,1], index: 1, kind: output, shape index: {}]
  $region1: #{tile.0} parent=0
    #allocation0 [shape = 'u8[4096]{0}', space=vmem, size = 0x1000, scoped, tag = 'scoped mem for input reshape']
    %s3 = sshll.u32 1, 2
    %s4 = ssub.s32 %s3, 1
    %v5 = vld [vmem:[%s0] sm:%s4]
    %6 = vst [vmem:[#allocation0] sm:%s4] %v5
    %v7 = vld [vmem:[#allocation0] sm:$0x3]
    %vm8 = vcmask 7168
    %9 = vst.msk [vmem:[%s1] ss:$4 sm:$0x3] %vm8, %v7
    %v10 = vld [vmem:[#allocation0] sm:$0x3]
    %11 = vrot.lane.b32.xlu0 %v10, 127
    %v12 = vpop.permute.xlu0 %11
    %vm13 = vcmask 7168
    %s14 = scalar_lea.vmem %s1, 1
    %15 = vst.msk [vmem:[%s14] ss:$4 sm:$0x3] %vm13, %v12
    %v16 = vld [vmem:[#allocation0] sm:$0x3]
    %17 = vrot.lane.b32.xlu0 %v16, 126
    %v18 = vpop.permute.xlu0 %17
    %vm19 = vcmask 7168
    %s20 = scalar_lea.vmem %s1, 2
    %21 = vst.msk [vmem:[%s20] ss:$4 sm:$0x3] %vm19, %v18
    %v22 = vld [vmem:[#allocation0] sm:$0x3]
    %23 = vrot.lane.b32.xlu0 %v22, 125
    %v24 = vpop.permute.xlu0 %23
    %vm25 = vcmask 7168
    %s26 = scalar_lea.vmem %s1, 3
    %27 = vst.msk [vmem:[%s26] ss:$4 sm:$0x3] %vm25, %v24

// kernel: residual_forward.1
$region0: #{residual_forward.1}
  #allocation0 [shape = 'u32[]', space=smem, size = 0x4, offset = 0x4, fixed_abs, tag = 'smem constant byte address 0x4 - core index']
  #allocation1 [shape = 'u32[144,128]{1,0:T(1,128)}', space=vmem, size = 0x12000, scoped, tag = 'internal scratch']
  %s0 = inlined_call_operand.vmem [shape: f32[8,256], index: 0, kind: input, shape index: {}]
  %s1 = inlined_call_operand.vmem [shape: f32[8,256], index: 1, kind: input, shape index: {}]
  %s2 = inlined_call_operand.vmem [shape: f32[8,72], index: 2, kind: input, shape index: {}]
  %s3 = inlined_call_operand.vmem [shape: f32[8,1], index: 3, kind: input, shape index: {}]
  %s4 = inlined_call_operand.vmem [shape: f32[8,1], index: 4, kind: input, shape index: {}]
  %s5 = inlined_call_operand.vmem [shape: f32[8,72], index: 5, kind: input, shape index: {}]
  %s6 = inlined_call_operand.vmem [shape: f32[8,1], index: 6, kind: input, shape index: {}]
  %s7 = inlined_call_operand.vmem [shape: f32[8,1], index: 7, kind: input, shape index: {}]
  %s8 = inlined_call_operand.vmem [shape: f32[8,256], index: 8, kind: output, shape index: {}]
  %s9 = sld [smem:[#allocation0]]
  $region42: #{residual_forward.1} parent=0
    _
  %s11 = ssub.s32 1, %s9
  %s12 = scalar_select 0, %s11, %s9
  // Predicated region
  $region2: #{residual_forward.1} parent=0 // pred_check
    _
  $region3: #{residual_forward.1} parent=0 // pred_check_branch
    %14 = sbr.rel (0) target = $region5
  $region4: #{residual_forward.1} parent=0 // pred_region
    _
  $region5: #{residual_forward.1} parent=0 // pred_fallthru
    _
  // Predicated region
  $region6: #{residual_forward.1} parent=0 // pred_check
    _
  $region7: #{residual_forward.1} parent=0 // pred_check_branch
    %16 = sbr.rel (0) target = $region9
  $region8: #{residual_forward.1} parent=0 // pred_region
    _
  $region9: #{residual_forward.1} parent=0 // pred_fallthru
    _
  // Predicated region
  $region10: #{residual_forward.1} parent=0 // pred_check
    _
  $region11: #{residual_forward.1} parent=0 // pred_check_branch
    %18 = sbr.rel (0) target = $region13
  $region12: #{residual_forward.1} parent=0 // pred_region
    _
  $region13: #{residual_forward.1} parent=0 // pred_fallthru
    _
  // Predicated region
  $region14: #{residual_forward.1} parent=0 // pred_check
    _
  $region15: #{residual_forward.1} parent=0 // pred_check_branch
    %20 = sbr.rel (0) target = $region17
  $region16: #{residual_forward.1} parent=0 // pred_region
    _
  $region17: #{residual_forward.1} parent=0 // pred_fallthru
    _
  // Predicated region
  $region18: #{residual_forward.1} parent=0 // pred_check
    _
  $region19: #{residual_forward.1} parent=0 // pred_check_branch
    %22 = sbr.rel (0) target = $region21
  $region20: #{residual_forward.1} parent=0 // pred_region
    _
  $region21: #{residual_forward.1} parent=0 // pred_fallthru
    _
  // Predicated region
  $region22: #{residual_forward.1} parent=0 // pred_check
    _
  $region23: #{residual_forward.1} parent=0 // pred_check_branch
    %24 = sbr.rel (0) target = $region25
  $region24: #{residual_forward.1} parent=0 // pred_region
    _
  $region25: #{residual_forward.1} parent=0 // pred_fallthru
    _
  // Predicated region
  $region26: #{residual_forward.1} parent=0 // pred_check
    _
  $region27: #{residual_forward.1} parent=0 // pred_check_branch
    %26 = sbr.rel (0) target = $region29
  $region28: #{residual_forward.1} parent=0 // pred_region
    _
  $region29: #{residual_forward.1} parent=0 // pred_fallthru
    _
  // Predicated region
  $region30: #{residual_forward.1} parent=0 // pred_check
    _
  $region31: #{residual_forward.1} parent=0 // pred_check_branch
    %28 = sbr.rel (0) target = $region33
  $region32: #{residual_forward.1} parent=0 // pred_region
    _
  $region33: #{residual_forward.1} parent=0 // pred_fallthru
    _
  %v29 = vld [vmem:[%s0] sm:$0xff]
  %v30 = vld [vmem:[%s0 + $0x8] sm:$0xff]
  %v31 = vld [vmem:[%s1] sm:$0xff]
  %v32 = vld [vmem:[%s1 + $0x8] sm:$0xff]
  %v33 = vld [vmem:[%s2] sm:$0xff]
  %34 = vrot.lane.b32.xlu0 %v29, 17
  %v35 = vpop.permute.xlu0 %34
  %36 = vrot.lane.b32.xlu0 %v30, 17
  %v37 = vpop.permute.xlu0 %36
  %v38 = vlaneseq
  %v39 = vand.u32 %v38, 127
  %vm40 = vcmp.lt.s32.totalorder %v39, 17
  %v41 = vsel %vm40, %v35, %v37
  %v42 = vsel %vm40, %v37, %v35
  %v43 = vlaneseq
  %v44 = vshrl.u32 %v43, 7
  %v45 = vsub.s32 0, %v44
  %v46 = vrot.slane %v31, %v45
  %v47 = vlaneseq
  %v48 = vshrl.u32 %v47, 7
  %v49 = vsub.s32 0, %v48
  %v50 = vrot.slane %v32, %v49
  %v51 = vmul.f32 %v42, %v46
  %v52 = vmul.f32 %v41, %v50
  %53 = vrot.lane.b32.xlu0 %v29, 16
  %v54 = vpop.permute.xlu0 %53
  %55 = vrot.lane.b32.xlu0 %v30, 16
  %v56 = vpop.permute.xlu0 %55
  %vm57 = vcmp.lt.s32.totalorder %v39, 16
  %v58 = vsel %vm57, %v54, %v56
  %v59 = vsel %vm57, %v56, %v54
  %v60 = vlaneseq
  %v61 = vshrl.u32 %v60, 7
  %v62 = vsub.s32 1, %v61
  %v63 = vrot.slane %v31, %v62
  %v64 = vlaneseq
  %v65 = vshrl.u32 %v64, 7
  %v66 = vsub.s32 1, %v65
  %v67 = vrot.slane %v32, %v66
  %v68 = vmul.f32 %v59, %v63
  %v69 = vmul.f32 %v58, %v67
  %70 = vrot.lane.b32.xlu0 %v29, 15
  %v71 = vpop.permute.xlu0 %70
  %72 = vrot.lane.b32.xlu0 %v30, 15
  %v73 = vpop.permute.xlu0 %72
  %vm74 = vcmp.lt.s32.totalorder %v39, 15
  %v75 = vsel %vm74, %v71, %v73
  %v76 = vsel %vm74, %v73, %v71
  %v77 = vlaneseq
  %v78 = vshrl.u32 %v77, 7
  %v79 = vsub.s32 2, %v78
  %v80 = vrot.slane %v31, %v79
  %v81 = vlaneseq
  %v82 = vshrl.u32 %v81, 7
  %v83 = vsub.s32 2, %v82
  %v84 = vrot.slane %v32, %v83
  %v85 = vmul.f32 %v76, %v80
  %v86 = vmul.f32 %v75, %v84
  %87 = vrot.lane.b32.xlu0 %v29, 1
  %v88 = vpop.permute.xlu0 %87
  %89 = vrot.lane.b32.xlu0 %v30, 1
  %v90 = vpop.permute.xlu0 %89
  %vm91 = vcmp.lt.s32.totalorder %v39, 1
  %v92 = vsel %vm91, %v88, %v90
  %v93 = vsel %vm91, %v90, %v88
  %v94 = vlaneseq
  %v95 = vshrl.u32 %v94, 7
  %v96 = vsub.s32 3, %v95
  %v97 = vrot.slane %v31, %v96
  %v98 = vlaneseq
  %v99 = vshrl.u32 %v98, 7
  %v100 = vsub.s32 3, %v99
  %v101 = vrot.slane %v32, %v100
  %v102 = vmul.f32 %v93, %v97
  %v103 = vmul.f32 %v92, %v101
  %104 = vrot.lane.b32.xlu0 %v29, 127
  %v105 = vpop.permute.xlu0 %104
  %106 = vrot.lane.b32.xlu0 %v30, 127
  %v107 = vpop.permute.xlu0 %106
  %vm108 = vcmp.lt.s32.totalorder %v39, 127
  %v109 = vsel %vm108, %v105, %v107
  %v110 = vsel %vm108, %v107, %v105
  %v111 = vlaneseq
  %v112 = vshrl.u32 %v111, 7
  %v113 = vsub.s32 4, %v112
  %v114 = vrot.slane %v31, %v113
  %v115 = vlaneseq
  %v116 = vshrl.u32 %v115, 7
  %v117 = vsub.s32 4, %v116
  %v118 = vrot.slane %v32, %v117
  %v119 = vmul.f32 %v109, %v114
  %v120 = vmul.f32 %v110, %v118
  %121 = vrot.lane.b32.xlu0 %v29, 113
  %v122 = vpop.permute.xlu0 %121
  %123 = vrot.lane.b32.xlu0 %v30, 113
  %v124 = vpop.permute.xlu0 %123
  %vm125 = vcmp.lt.s32.totalorder %v39, 113
  %v126 = vsel %vm125, %v122, %v124
  %v127 = vsel %vm125, %v124, %v122
  %v128 = vlaneseq
  %v129 = vshrl.u32 %v128, 7
  %v130 = vsub.s32 5, %v129
  %v131 = vrot.slane %v31, %v130
  %v132 = vlaneseq
  %v133 = vshrl.u32 %v132, 7
  %v134 = vsub.s32 5, %v133
  %v135 = vrot.slane %v32, %v134
  %v136 = vmul.f32 %v126, %v131
  %v137 = vmul.f32 %v127, %v135
  %138 = vrot.lane.b32.xlu0 %v29, 112
  %v139 = vpop.permute.xlu0 %138
  %140 = vrot.lane.b32.xlu0 %v30, 112
  %v141 = vpop.permute.xlu0 %140
  %vm142 = vcmp.lt.s32.totalorder %v39, 112
  %v143 = vsel %vm142, %v139, %v141
  %v144 = vsel %vm142, %v141, %v139
  %v145 = vlaneseq
  %v146 = vshrl.u32 %v145, 7
  %v147 = vsub.s32 6, %v146
  %v148 = vrot.slane %v31, %v147
  %v149 = vlaneseq
  %v150 = vshrl.u32 %v149, 7
  %v151 = vsub.s32 6, %v150
  %v152 = vrot.slane %v32, %v151
  %v153 = vmul.f32 %v143, %v148
  %v154 = vmul.f32 %v144, %v152
  %155 = vrot.lane.b32.xlu0 %v29, 111
  %v156 = vpop.permute.xlu0 %155
  %157 = vrot.lane.b32.xlu0 %v30, 111
  %v158 = vpop.permute.xlu0 %157
  %vm159 = vcmp.lt.s32.totalorder %v39, 111
  %v160 = vsel %vm159, %v156, %v158
  %v161 = vsel %vm159, %v158, %v156
  %v162 = vlaneseq
  %v163 = vshrl.u32 %v162, 7
  %v164 = vsub.s32 7, %v163
  %v165 = vrot.slane %v31, %v164
  %v166 = vlaneseq
  %v167 = vshrl.u32 %v166, 7
  %v168 = vsub.s32 7, %v167
  %v169 = vrot.slane %v32, %v168
  %v170 = vmul.f32 %v160, %v165
  %v171 = vmul.f32 %v161, %v169
  %vm172 = vcmask 588800
  %v174 = vsel %vm172, %v33, 0
  %176 = vmatprep.subr.mxu0 0.0
  %177 = vmatpush1.msra.mxu0 0.0
  %178 = vmatprep.subr.mxu0 0.0
  %179 = vmatpush1.msra.mxu0 0.0
  %180 = vmatprep.subr.mxu0 0.0
  %181 = vmatpush1.msra.mxu0 0.0
  %182 = vmatprep.subr.mxu0 0.0
  %183 = vmatpush1.msra.mxu0 0.0
  %184 = vmatprep.subr.mxu0 0.0
  %185 = vmatpush1.msra.mxu0 0.0
  %186 = vmatprep.subr.mxu0 0.0
  %187 = vmatpush1.msra.mxu0 0.0
  %188 = vmatprep.subr.mxu0 0.0
  %189 = vmatpush1.msra.mxu0 0.0
  %190 = vmatprep.subr.mxu0 %v171
  %191 = vmatpush1.msra.mxu0 %v170
  %192 = vmatprep.subr.mxu0 %v154
  %193 = vmatpush1.msra.mxu0 %v153
  %194 = vmatprep.subr.mxu0 %v137
  %195 = vmatpush1.msra.mxu0 %v136
  %196 = vmatprep.subr.mxu0 %v120
  %197 = vmatpush1.msra.mxu0 %v119
  %198 = vmatprep.subr.mxu0 %v30
  %199 = vmatpush1.msra.mxu0 %v29
  %200 = vmatprep.subr.mxu0 %v103
  %201 = vmatpush1.msra.mxu0 %v102
  %202 = vmatprep.subr.mxu0 %v86
  %203 = vmatpush1.msra.mxu0 %v85
  %204 = vmatprep.subr.mxu0 %v69
  %205 = vmatpush1.msra.mxu0 %v68
  %206 = vmatprep.subr.mxu0 %v52
  %207 = vmatpush1.msra.mxu0 %v51
  %208 = vmatprep.subr.mxu0 0.0
  %209 = vmatpush2.msra.mxu0 0.0
  %210 = vmatprep.subr.mxu0 0.0
  %211 = vmatpush2.msra.mxu0 0.0
  %212 = vmatprep.subr.mxu0 0.0
  %213 = vmatpush2.msra.mxu0 0.0
  %214 = vmatprep.subr.mxu0 0.0
  %215 = vmatpush2.msra.mxu0 0.0
  %216 = vmatprep.subr.mxu0 0.0
  %217 = vmatpush2.msra.mxu0 0.0
  %218 = vmatprep.subr.mxu0 0.0
  %219 = vmatpush2.msra.mxu0 0.0
  %220 = vmatprep.subr.mxu0 0.0
  %221 = vmatpush2.msra.mxu0 0.0
  %222 = vmatprep.subr.mxu0 0.0
  %223 = vmatpush2.msra.mxu0 0.0
  %224 = vmatprep.subr.mxu0 0.0
  %225 = vmatpush2.msra.mxu0 0.0
  %226 = vmatprep.subr.mxu0 0.0
  %227 = vmatpush2.msra.mxu0 0.0
  %228 = vmatprep.subr.mxu0 0.0
  %229 = vmatpush2.msra.mxu0 0.0
  %230 = vmatprep.subr.mxu0 0.0
  %231 = vmatpush2.msra.mxu0 0.0
  %232 = vmatprep.subr.mxu0 0.0
  %233 = vmatpush2.msra.mxu0 0.0
  %234 = vmatprep.subr.mxu0 0.0
  %235 = vmatpush2.msra.mxu0 0.0
  %236 = vmatprep.subr.mxu0 0.0
  %237 = vmatpush2.msra.mxu0 0.0
  %238 = vmatprep.subr.mxu0 0.0
  %239 = vmatpush2.msra.mxu0 0.0
  %240 = vmatprep.mubr.f32.mxu0 0.0
  %241 = vmatmul.mubr.f32.gmra.mxu0 %v174
  %v242 = vpop.f32.mrf.mxu0
  %v243 = vadd.f32 0.0, %v242
  %v244 = vpop.f32.mrf.mxu0
  %v245 = vadd.f32 0.0, %v244
  %246 = vdwg.mxu0
  %v247 = vld [vmem:[%s3] sm:$0xff]
  %v248 = vld [vmem:[%s4] sm:$0xff]
  %v249 = vrot.slane %v243, 4
  %v250 = vrot.slane %v245, 4
  %v251 = vadd.f32 %v243, %v249
  %v252 = vadd.f32 %v245, %v250
  %v253 = vadd.f32 %v251, %v252
  %254 = vadd.xlane.f32.xlu0 %v253
  %v255 = vpop.xlane.xlu0 %254
  %v256 = vmul.f32 %v255, 0.001953125
  %v257 = vsub.f32 %v243, %v256
  %v258 = vsub.f32 %v245, %v256
  %v259 = vmul.f32 %v257, %v257
  %v260 = vmul.f32 %v258, %v258
  %v261 = vrot.slane %v259, 4
  %v262 = vrot.slane %v260, 4
  %v263 = vadd.f32 %v259, %v261
  %v264 = vadd.f32 %v260, %v262
  %v265 = vadd.f32 %v263, %v264
  %266 = vadd.xlane.f32.xlu0 %v265
  %v267 = vpop.xlane.xlu0 %266
  %v268 = vmul.f32 %v267, 0.001953125
  %v269 = vadd.f32 %v268, 1e-05
  %v270 = vrsqrt.pop %v269
  %v271 = vmul.f32 %v247, %v270
  %273 = vset.pattern.permute.xlu0 0
  %274 = vperm.xlu0 %273, %v271
  %v275 = vpop.permute.xlu0 %274
  %v277 = vmul.f32 %v257, %v275
  %v278 = vmul.f32 %v258, %v275
  %280 = vset.pattern.permute.xlu0 0
  %281 = vperm.xlu0 %280, %v248
  %v282 = vpop.permute.xlu0 %281
  %v284 = vadd.f32 %v277, %v282
  %v285 = vadd.f32 %v278, %v282
  %v286 = vmax.f32 %v284, 0.0
  %v287 = vmax.f32 %v285, 0.0
  %v288 = vld [vmem:[%s5] sm:$0xff]
  %289 = vrot.lane.b32.xlu0 %v286, 17
  %v290 = vpop.permute.xlu0 %289
  %291 = vrot.lane.b32.xlu0 %v287, 17
  %v292 = vpop.permute.xlu0 %291
  %v293 = vsel %vm40, %v290, %v292
  %v294 = vsel %vm40, %v292, %v290
  %v295 = vmul.f32 %v294, %v46
  %v296 = vmul.f32 %v293, %v50
  %297 = vrot.lane.b32.xlu0 %v286, 16
  %v298 = vpop.permute.xlu0 %297
  %299 = vrot.lane.b32.xlu0 %v287, 16
  %v300 = vpop.permute.xlu0 %299
  %v301 = vsel %vm57, %v298, %v300
  %v302 = vsel %vm57, %v300, %v298
  %v303 = vmul.f32 %v302, %v63
  %v304 = vmul.f32 %v301, %v67
  %305 = vrot.lane.b32.xlu0 %v286, 15
  %v306 = vpop.permute.xlu0 %305
  %307 = vrot.lane.b32.xlu0 %v287, 15
  %v308 = vpop.permute.xlu0 %307
  %v309 = vsel %vm74, %v306, %v308
  %v310 = vsel %vm74, %v308, %v306
  %v311 = vmul.f32 %v310, %v80
  %v312 = vmul.f32 %v309, %v84
  %313 = vrot.lane.b32.xlu0 %v286, 1
  %v314 = vpop.permute.xlu0 %313
  %315 = vrot.lane.b32.xlu0 %v287, 1
  %v316 = vpop.permute.xlu0 %315
  %v317 = vsel %vm91, %v314, %v316
  %v318 = vsel %vm91, %v316, %v314
  %v319 = vmul.f32 %v318, %v97
  %v320 = vmul.f32 %v317, %v101
  %321 = vrot.lane.b32.xlu0 %v286, 127
  %v322 = vpop.permute.xlu0 %321
  %323 = vrot.lane.b32.xlu0 %v287, 127
  %v324 = vpop.permute.xlu0 %323
  %v325 = vsel %vm108, %v322, %v324
  %v326 = vsel %vm108, %v324, %v322
  %v327 = vmul.f32 %v325, %v114
  %v328 = vmul.f32 %v326, %v118
  %329 = vrot.lane.b32.xlu0 %v286, 113
  %v330 = vpop.permute.xlu0 %329
  %331 = vrot.lane.b32.xlu0 %v287, 113
  %v332 = vpop.permute.xlu0 %331
  %v333 = vsel %vm125, %v330, %v332
  %v334 = vsel %vm125, %v332, %v330
  %v335 = vmul.f32 %v333, %v131
  %v336 = vmul.f32 %v334, %v135
  %337 = vrot.lane.b32.xlu0 %v286, 112
  %v338 = vpop.permute.xlu0 %337
  %339 = vrot.lane.b32.xlu0 %v287, 112
  %v340 = vpop.permute.xlu0 %339
  %v341 = vsel %vm142, %v338, %v340
  %v342 = vsel %vm142, %v340, %v338
  %v343 = vmul.f32 %v341, %v148
  %v344 = vmul.f32 %v342, %v152
  %345 = vrot.lane.b32.xlu0 %v286, 111
  %v346 = vpop.permute.xlu0 %345
  %347 = vrot.lane.b32.xlu0 %v287, 111
  %v348 = vpop.permute.xlu0 %347
  %v349 = vsel %vm159, %v346, %v348
  %v350 = vsel %vm159, %v348, %v346
  %v351 = vmul.f32 %v349, %v165
  %v352 = vmul.f32 %v350, %v169
  %v354 = vsel %vm172, %v288, 0
  %356 = vmatprep.subr.mxu0 0.0
  %357 = vmatpush1.msra.mxu0 0.0
  %358 = vmatprep.subr.mxu0 0.0
  %359 = vmatpush1.msra.mxu0 0.0
  %360 = vmatprep.subr.mxu0 0.0
  %361 = vmatpush1.msra.mxu0 0.0
  %362 = vmatprep.subr.mxu0 0.0
  %363 = vmatpush1.msra.mxu0 0.0
  %364 = vmatprep.subr.mxu0 0.0
  %365 = vmatpush1.msra.mxu0 0.0
  %366 = vmatprep.subr.mxu0 0.0
  %367 = vmatpush1.msra.mxu0 0.0
  %368 = vmatprep.subr.mxu0 0.0
  %369 = vmatpush1.msra.mxu0 0.0
  %370 = vmatprep.subr.mxu0 %v352
  %371 = vmatpush1.msra.mxu0 %v351
  %372 = vmatprep.subr.mxu0 %v344
  %373 = vmatpush1.msra.mxu0 %v343
  %374 = vmatprep.subr.mxu0 %v336
  %375 = vmatpush1.msra.mxu0 %v335
  %376 = vmatprep.subr.mxu0 %v328
  %377 = vmatpush1.msra.mxu0 %v327
  %378 = vmatprep.subr.mxu0 %v287
  %379 = vmatpush1.msra.mxu0 %v286
  %380 = vmatprep.subr.mxu0 %v320
  %381 = vmatpush1.msra.mxu0 %v319
  %382 = vmatprep.subr.mxu0 %v312
  %383 = vmatpush1.msra.mxu0 %v311
  %384 = vmatprep.subr.mxu0 %v304
  %385 = vmatpush1.msra.mxu0 %v303
  %386 = vmatprep.subr.mxu0 %v296
  %387 = vmatpush1.msra.mxu0 %v295
  %388 = vmatprep.subr.mxu0 0.0
  %389 = vmatpush2.msra.mxu0 0.0
  %390 = vmatprep.subr.mxu0 0.0
  %391 = vmatpush2.msra.mxu0 0.0
  %392 = vmatprep.subr.mxu0 0.0
  %393 = vmatpush2.msra.mxu0 0.0
  %394 = vmatprep.subr.mxu0 0.0
  %395 = vmatpush2.msra.mxu0 0.0
  %396 = vmatprep.subr.mxu0 0.0
  %397 = vmatpush2.msra.mxu0 0.0
  %398 = vmatprep.subr.mxu0 0.0
  %399 = vmatpush2.msra.mxu0 0.0
  %400 = vmatprep.subr.mxu0 0.0
  %401 = vmatpush2.msra.mxu0 0.0
  %402 = vmatprep.subr.mxu0 0.0
  %403 = vmatpush2.msra.mxu0 0.0
  %404 = vmatprep.subr.mxu0 0.0
  %405 = vmatpush2.msra.mxu0 0.0
  %406 = vmatprep.subr.mxu0 0.0
  %407 = vmatpush2.msra.mxu0 0.0
  %408 = vmatprep.subr.mxu0 0.0
  %409 = vmatpush2.msra.mxu0 0.0
  %410 = vmatprep.subr.mxu0 0.0
  %411 = vmatpush2.msra.mxu0 0.0
  %412 = vmatprep.subr.mxu0 0.0
  %413 = vmatpush2.msra.mxu0 0.0
  %414 = vmatprep.subr.mxu0 0.0
  %415 = vmatpush2.msra.mxu0 0.0
  %416 = vmatprep.subr.mxu0 0.0
  %417 = vmatpush2.msra.mxu0 0.0
  %418 = vmatprep.subr.mxu0 0.0
  %419 = vmatpush2.msra.mxu0 0.0
  %420 = vmatprep.mubr.f32.mxu0 0.0
  %421 = vmatmul.mubr.f32.gmra.mxu0 %v354
  %v422 = vpop.f32.mrf.mxu0
  %v423 = vadd.f32 0.0, %v422
  %v424 = vpop.f32.mrf.mxu0
  %v425 = vadd.f32 0.0, %v424
  %426 = vdwg.mxu0
  %v427 = vld [vmem:[%s6] sm:$0xff]
  %v428 = vld [vmem:[%s7] sm:$0xff]
  %v429 = vrot.slane %v423, 4
  %v430 = vrot.slane %v425, 4
  %v431 = vadd.f32 %v423, %v429
  %v432 = vadd.f32 %v425, %v430
  %v433 = vadd.f32 %v431, %v432
  %434 = vadd.xlane.f32.xlu0 %v433
  %v435 = vpop.xlane.xlu0 %434
  %v436 = vmul.f32 %v435, 0.001953125
  %v437 = vsub.f32 %v423, %v436
  %v438 = vsub.f32 %v425, %v436
  %v439 = vmul.f32 %v437, %v437
  %v440 = vmul.f32 %v438, %v438
  %v441 = vrot.slane %v439, 4
  %v442 = vrot.slane %v440, 4
  %v443 = vadd.f32 %v439, %v441
  %v444 = vadd.f32 %v440, %v442
  %v445 = vadd.f32 %v443, %v444
  %446 = vadd.xlane.f32.xlu0 %v445
  %v447 = vpop.xlane.xlu0 %446
  %v448 = vmul.f32 %v447, 0.001953125
  %v449 = vadd.f32 %v448, 1e-05
  %v450 = vrsqrt.pop %v449
  %v451 = vmul.f32 %v427, %v450
  %453 = vset.pattern.permute.xlu0 0
  %454 = vperm.xlu0 %453, %v451
  %v455 = vpop.permute.xlu0 %454
  %v457 = vmul.f32 %v437, %v455
  %v458 = vmul.f32 %v438, %v455
  %460 = vset.pattern.permute.xlu0 0
  %461 = vperm.xlu0 %460, %v428
  %v462 = vpop.permute.xlu0 %461
  %v464 = vadd.f32 %v457, %v462
  %v465 = vadd.f32 %v458, %v462
  %v466 = vadd.f32 %v464, %v29
  %v467 = vadd.f32 %v465, %v30
  %v468 = vmax.f32 %v466, 0.0
  %v469 = vmax.f32 %v467, 0.0
  %470 = vst [vmem:[%s8] sm:$0xff] %v468
  %471 = vst [vmem:[%s8 + $0x8] sm:$0xff] %v469
  // Predicated region
  $region34: #{residual_forward.1} parent=0 // pred_check
    _
  $region35: #{residual_forward.1} parent=0 // pred_check_branch
    %473 = sbr.rel (0) target = $region37
  $region36: #{residual_forward.1} parent=0 // pred_region
    _
  $region37: #{residual_forward.1} parent=0 // pred_fallthru
    _
  // Predicated region
  $region38: #{residual_forward.1} parent=0 // pred_check
    _
  $region39: #{residual_forward.1} parent=0 // pred_check_branch
    %475 = sbr.rel (0) target = $region41
  $region40: #{residual_forward.1} parent=0 // pred_region
    _
  $region41: #{residual_forward.1} parent=0 // pred_fallthru
    _

</llo_original>
